<compile_context>
chip_gen: v7x
topology: tpu7x:2x2x1
jax: 0.10.0
libtpu: 0.0.40
codegen_flags: <defaults>
</compile_context>

<pallas_src>
import jax
import jax.numpy as jnp
from jax.experimental import pallas as pl
from jax.experimental.pallas import tpu as pltpu


def _swish_kernel(x_ref, o_ref):
    x = x_ref[...]
    # f32 compute for accuracy; exp goes to the EUP and the kernel is HBM-bound
    # on all generations, so the sigmoid formulation is off the critical path.
    xf = x.astype(jnp.float32)
    o_ref[...] = (xf * jax.nn.sigmoid(xf)).astype(o_ref.dtype)


_TARGET_BLOCK_BYTES = 8 * 1024 * 1024   # per-array per-buffer block (~8 MiB)
_MIN_SPLIT_BYTES = 2 * 1024 * 1024      # above this, force >=2 grid steps (v7x megacore)
_HEADROOM_BYTES = 8 * 1024 * 1024       # slack for Mosaic-internal scratch
_SAFE_TOTAL_VMEM = 48 * 1024 * 1024     # ceiling that fits v7x's 64 MiB physical VMEM


def _vmem_budget_bytes():
    """Generation-aware VMEM budget (defensive: safe defaults if query fails)."""
    phys = 64 * 1024 * 1024  # assume the smallest generation (v7x) if unknown
    try:
        info = pltpu.get_tpu_info()
        for name in ("vmem_capacity_bytes", "vmem_size_bytes", "vmem_bytes"):
            v = getattr(info, name, None)
            if v:
                phys = int(v)
                break
    except Exception:
        pass
    return int(min(_SAFE_TOTAL_VMEM, (phys * 3) // 4))


def _swish_slab(x2d, *, donate=False):
    """Swish on a lane-dense (rows, lanes) slab via one pallas_call."""
    rows, lanes = x2d.shape
    dtype = x2d.dtype
    itemsize = jnp.dtype(dtype).itemsize
    # Packed-sublane alignment: 8 rows for 4-byte, 16 for bf16/f16, 32 for int8/fp8.
    sublane = {1: 32, 2: 16}.get(itemsize, 8)

    budget = _vmem_budget_bytes()
    # 4 buffers live at once (in + out, double-buffered) -> budget/4 per block.
    target_bytes = min(_TARGET_BLOCK_BYTES,
                       max(lanes * itemsize * sublane, (budget - _HEADROOM_BYTES) // 4))
    block_rows = max(sublane, (target_bytes // (lanes * itemsize)) // sublane * sublane)

    total_bytes = rows * lanes * itemsize
    if total_bytes > _MIN_SPLIT_BYTES:
        # Keep ~4 (>=2) grid steps so both v7x TensorCores get sharded work.
        cap = pl.cdiv(pl.cdiv(rows, 4), sublane) * sublane
        block_rows = min(block_rows, max(sublane, cap))

    if rows <= block_rows:
        # Tiny input: one full-extent block (sidesteps (8,128) divisibility).
        block_rows = rows
        grid = (1,)
    else:
        # Ragged tail block is masked by Pallas; no padding required.
        grid = (pl.cdiv(rows, block_rows),)

    block_bytes = block_rows * lanes * itemsize
    vmem_limit = int(min(budget, 4 * block_bytes + _HEADROOM_BYTES))

    n_elems = rows * lanes
    cost = pl.CostEstimate(flops=3 * n_elems,
                           transcendentals=n_elems,
                           bytes_accessed=2 * n_elems * itemsize)

    return pl.pallas_call(
        _swish_kernel,
        out_shape=jax.ShapeDtypeStruct((rows, lanes), dtype),
        grid_spec=pltpu.PrefetchScalarGridSpec(
            num_scalar_prefetch=0,
            grid=grid,
            in_specs=[pl.BlockSpec((block_rows, lanes), lambda i: (i, 0))],
            out_specs=pl.BlockSpec((block_rows, lanes), lambda i: (i, 0)),
        ),
        compiler_params=pltpu.CompilerParams(
            # Independent steps: lets megacore (v7x) shard the grid across TCs.
            dimension_semantics=("parallel",),
            vmem_limit_bytes=vmem_limit,
        ),
        cost_estimate=cost,
        # Optional buffer reuse when the caller donates x (saves an HBM alloc).
        input_output_aliases=({0: 0} if donate else {}),
    )(x2d)


def swish(x, *, donate=False):
    """Elementwise Swish (x * sigmoid(x)). Works for any shape/dtype."""
    orig_shape = x.shape
    orig_dtype = x.dtype
    n = x.size
    if n == 0:
        return x

    # Prefer a wider lane-dense slab when it divides exactly (common for NN
    # tensors) -> longer contiguous DMAs and unmasked stores; else 128 lanes.
    lanes = 512 if n % 512 == 0 else 128
    x_flat = jnp.ravel(x)  # contiguous reshape: no HBM copy

    rem = n % lanes
    if rem == 0:
        out2d = _swish_slab(x_flat.reshape(n // lanes, lanes), donate=donate)
        return out2d.reshape(orig_shape)

    # Ragged size (rare for NN tensors): kernel on the lane-divisible prefix,
    # plain jnp for the < lanes-element tail.  Avoids the full-input jnp.pad
    # copy; the concatenate still costs one output pass.
    # TODO(synk): a fully copy-free ragged path would need an in-kernel masked
    # store over a padded view, which can't be built without the pad itself.
    n_main = n - rem
    tail = x_flat[n_main:].astype(jnp.float32)
    out_tail = (tail * jax.nn.sigmoid(tail)).astype(orig_dtype)
    if n_main == 0:
        return out_tail.reshape(orig_shape)
    out_main = _swish_slab(x_flat[:n_main].reshape(n_main // lanes, lanes))
    return jnp.concatenate([out_main.reshape(-1), out_tail]).reshape(orig_shape)


if __name__ == "__main__":
    key = jax.random.PRNGKey(0)
    x = jax.random.normal(key, (2, 4, 16, 16), dtype=jnp.float32)  # NCHW

    out = jax.block_until_ready(swish(x))

    # Reference check in plain JAX.
    ref = x * jax.nn.sigmoid(x)
    assert out.shape == x.shape and out.dtype == x.dtype
    assert jnp.allclose(out, ref, atol=1e-6, rtol=1e-6)

    print("KERNEL_OK")
</pallas_src>

<mosaic_0001>
module attributes {stable_mosaic.version = 11 : i64} {
  func.func @_swish_kernel(%arg0: i32, %arg1: memref<4x512xf32, #tpu.memory_space<vmem>>, %arg2: memref<4x512xf32, #tpu.memory_space<vmem>>) attributes {dimension_semantics = [#tpu.dimension_semantics<parallel>], iteration_bounds = array<i64: 1>, scalar_prefetch = 0 : i64, scratch_operands = 0 : i64, tpu.core_type = #tpu.core_type<tc>, window_params = [{transform_indices = @transform_0, window_bounds = array<i64: 4, 512>}, {transform_indices = @transform_1, window_bounds = array<i64: 4, 512>}]} {
    %c0 = arith.constant 0 : index
    %c0_0 = arith.constant 0 : index
    %0 = vector.load %arg1[%c0, %c0_0] : memref<4x512xf32, #tpu.memory_space<vmem>>, vector<4x512xf32>
    %1 = arith.negf %0 : vector<4x512xf32>
    %2 = math.exp %1 : vector<4x512xf32>
    %cst = arith.constant 1.000000e+00 : f32
    %3 = vector.broadcast %cst : f32 to vector<4x512xf32>
    %4 = arith.addf %3, %2 : vector<4x512xf32>
    %5 = arith.divf %3, %4 : vector<4x512xf32>
    %6 = arith.mulf %0, %5 : vector<4x512xf32>
    %c0_1 = arith.constant 0 : index
    %c0_2 = arith.constant 0 : index
    %7 = vector.load %arg2[%c0_1, %c0_2] : memref<4x512xf32, #tpu.memory_space<vmem>>, vector<4x512xf32>
    tpu.vector_store %arg2[%c0_1, %c0_2], %6 {strides = array<i32>} : memref<4x512xf32, #tpu.memory_space<vmem>>, vector<4x512xf32>,
    return
  }
  func.func @transform_0(%arg0: i32) -> (i32, i32) {
    %c0_i32 = arith.constant 0 : i32
    %c0_i32_0 = arith.constant 0 : i32
    return %arg0, %c0_i32 : i32, i32
  }
  func.func @transform_1(%arg0: i32) -> (i32, i32) {
    %c0_i32 = arith.constant 0 : i32
    %c0_i32_0 = arith.constant 0 : i32
    return %arg0, %c0_i32 : i32, i32
  }
}

</mosaic_0001>

<llo_original>
// kernel: tpu_custom_call.1
$region0: #{tpu_custom_call.1}
  #allocation0 [shape = 'u32[]', space=smem, size = 0x4, offset = 0x4, fixed_abs, tag = 'smem constant byte address 0x4 - core index']
  #allocation1 [shape = 'u32[144,128]{1,0:T(1,128)}', space=vmem, size = 0x12000, scoped, tag = 'internal scratch']
  %s0 = inlined_call_operand.hbm [shape: f32[4,512], index: 0, kind: input, shape index: {}]
  %s1 = inlined_call_operand.hbm [shape: f32[4,512], index: 1, kind: output, shape index: {}]
  %s2 = sld [smem:[#allocation0]]
  $region18: #{tpu_custom_call.1} parent=0
    _
  %s4 = ssub.s32 1, %s2
  %s5 = scalar_select 0, %s4, %s2
  $region1: #{tpu_custom_call.1} parent=0
    #allocation2 [shape = 'u8[8192]{0}', space=vmem, size = 0x2000, scoped, tag = 'input window, operand 0, single buffered']
    #allocation3 [shape = 's32[1]{0}', space=sflag, size = 0x4, scoped, tag = 'scoped memory for tpu_custom_call.1']
    #allocation4 [shape = 's32[1]{0}', space=sflag, size = 0x4, scoped, tag = 'scoped memory for tpu_custom_call.1']
    #allocation5 [shape = 'u8[8192]{0}', space=vmem, size = 0x2000, scoped, tag = 'output window, operand 0, single buffered']
    %6 = vsyncpa [#allocation3], 0
    %7 = vsyncpa [#allocation4], 0
    // Predicated region
    $region2: #{tpu_custom_call.1} parent=1 // pred_check
      _
    $region3: #{tpu_custom_call.1} parent=1 // pred_check_branch
      %9 = sbr.rel (0) target = $region5
    $region4: #{tpu_custom_call.1} parent=1 // pred_region
      %s11 = ssub.s32 256, 256
      %12 = vsyncadd [#allocation3], %s11
      %s14 = sshll.u32 [#allocation2], 4
      %s15 = int_to_ptr.vmem [resolvable:$true] %s14
      %17 = dma.hbm_to_vmem [thread:$0]  %s0, 256, %s15, [#allocation3]
    $region5: #{tpu_custom_call.1} parent=1 // pred_fallthru
      _
    // Predicated region
    $region6: #{tpu_custom_call.1} parent=1 // pred_check
      _
    $region7: #{tpu_custom_call.1} parent=1 // pred_check_branch
      %19 = sbr.rel (0) target = $region9
    $region8: #{tpu_custom_call.1} parent=1 // pred_region
      %20 = dma.done [#allocation3], 256
    $region9: #{tpu_custom_call.1} parent=1 // pred_fallthru
      _
    %v21 = vld [vmem:[#allocation2] sm:$0xff]
    %v22 = vld [vmem:[#allocation2 + $0x8] sm:$0xff]
    %v23 = vxor.u32 %v21, 2147483648
    %v24 = vxor.u32 %v22, 2147483648
    %v25 = vmul.f32 %v23, 1.442695
    %v26 = vpow.pop %v25
    %v27 = vmul.f32 %v24, 1.442695
    %v28 = vpow.pop %v27
    %v29 = vadd.f32 %v26, 1.0
    %v30 = vadd.f32 %v28, 1.0
    %v31 = vrcp.pop %v29
    %v32 = vmul.f32 1.0, %v31
    %v33 = vrcp.pop %v30
    %v34 = vmul.f32 1.0, %v33
    %v35 = vmul.f32 %v21, %v32
    %v36 = vmul.f32 %v22, %v34
    %37 = vst [vmem:[#allocation5] sm:$0xff] %v35
    %38 = vst [vmem:[#allocation5 + $0x8] sm:$0xff] %v36
    // Predicated region
    $region10: #{tpu_custom_call.1} parent=1 // pred_check
      _
    $region11: #{tpu_custom_call.1} parent=1 // pred_check_branch
      %40 = sbr.rel (0) target = $region13
    $region12: #{tpu_custom_call.1} parent=1 // pred_region
      %s42 = ssub.s32 256, 256
      %43 = vsyncadd [#allocation4], %s42
      %s45 = sshll.u32 [#allocation5], 4
      %s46 = int_to_ptr.vmem [resolvable:$true] %s45
      %48 = dma.vmem_to_hbm [thread:$0]  %s46, 256, %s1, [#allocation4]
    $region13: #{tpu_custom_call.1} parent=1 // pred_fallthru
      _
    // Predicated region
    $region14: #{tpu_custom_call.1} parent=1 // pred_check
      _
    $region15: #{tpu_custom_call.1} parent=1 // pred_check_branch
      %50 = sbr.rel (0) target = $region17
    $region16: #{tpu_custom_call.1} parent=1 // pred_region
      %51 = dma.done [#allocation4], 256
    $region17: #{tpu_custom_call.1} parent=1 // pred_fallthru
      _
    %52 = vsyncpa [#allocation3], 1
    %53 = vsyncpa [#allocation4], 1

</llo_original>
